<compile_context>
chip_gen: v5e
topology: v5e:2x2
jax: 0.10.0
libtpu: 0.0.40
codegen_flags: <defaults>
</compile_context>

<pallas_src>
import functools

import jax
import jax.numpy as jnp
from jax import lax
from jax.experimental import pallas as pl
from jax.experimental.pallas import tpu as pltpu

LN_EPS = 1e-5                      # torch.nn.LayerNorm default
INV_SQRT2 = 0.7071067811865476

COMPUTE_DTYPE = jnp.bfloat16       # MXU operand dtype
ACT_DTYPE = jnp.bfloat16           # activation storage dtype (HBM traffic / 2)
VMEM_LIMIT = 32 * 1024 * 1024      # safe on v5e / v6e / v7x scoped budgets


# ------------------------------- helpers ------------------------------------

def _round_up(x, m):
    return ((x + m - 1) // m) * m


def _pick_tile(dim, candidates):
    """Largest candidate evenly dividing dim; full dim if small or no divisor."""
    if dim <= candidates[0]:
        return dim
    for c in candidates:
        if dim % c == 0:
            return c
    return dim


def _erf(x):
    # Abramowitz & Stegun 7.1.26; |error| < 1.5e-7 (below bf16 precision).
    # Built from exp / mul / add / where only -> guaranteed Mosaic lowering.
    a1, a2, a3, a4, a5 = (0.254829592, -0.284496736, 1.421413741,
                          -1.453152027, 1.061405429)
    p = 0.3275911
    sgn = jnp.where(x >= 0.0, 1.0, -1.0)
    ax = jnp.abs(x)
    t = 1.0 / (1.0 + p * ax)
    poly = ((((a5 * t + a4) * t + a3) * t + a2) * t + a1) * t
    y = 1.0 - poly * jnp.exp(-ax * ax)
    return sgn * y


def _gelu(x):
    # exact (erf) GELU, matching torch.nn.GELU default
    return 0.5 * x * (1.0 + _erf(x * INV_SQRT2))


# ----------------------------- Pallas kernels -------------------------------

def _matmul_kernel(*refs, activation, has_residual):
    """o = act(x @ w + b) (+ residual); fp32 accumulate across the K grid axis."""
    if has_residual:
        x_ref, w_ref, b_ref, r_ref, o_ref, acc_ref = refs
    else:
        x_ref, w_ref, b_ref, o_ref, acc_ref = refs
    k = pl.program_id(2)

    @pl.when(k == 0)
    def _():
        acc_ref[...] = jnp.zeros_like(acc_ref)

    acc_ref[...] += jnp.dot(x_ref[...], w_ref[...],
                            preferred_element_type=jnp.float32)

    @pl.when(k == pl.num_programs(2) - 1)
    def _():
        acc = acc_ref[...] + b_ref[...].astype(jnp.float32)
        if activation == "gelu":
            acc = _gelu(acc)
        if has_residual:
            acc = acc + r_ref[...].astype(jnp.float32)
        o_ref[...] = acc.astype(o_ref.dtype)


def _ln_matmul_kernel(x_ref, g_ref, bta_ref, w_ref, b_ref, o_ref, *, activation):
    """o = act(LayerNorm(x) @ w + b); LN fused as a matmul prologue (full K)."""
    x = x_ref[...].astype(jnp.float32)
    mu = jnp.mean(x, axis=-1, keepdims=True)
    xc = x - mu
    var = jnp.mean(xc * xc, axis=-1, keepdims=True)
    h = xc * lax.rsqrt(var + LN_EPS) * g_ref[...] + bta_ref[...]
    acc = jnp.dot(h.astype(COMPUTE_DTYPE), w_ref[...],
                  preferred_element_type=jnp.float32)
    acc = acc + b_ref[...].astype(jnp.float32)
    if activation == "gelu":
        acc = _gelu(acc)
    o_ref[...] = acc.astype(o_ref.dtype)


def _attention_kernel(qkv_ref, o_ref, *, num_heads, head_dim, seq_len, scale):
    """Multi-head attention for one batch image.

    qkv_ref: (1, S_pad, 3E) with columns [Q | K | V], head-major inside each E
    block (matches nn.Linear(E, 3E) + the usual (B,S,3,H,Dh) view).
    Heads are looped with static slices so all loads/stores stay lane-dense.
    """
    s_pad = qkv_ref.shape[1]
    E = num_heads * head_dim
    qkv = qkv_ref[0]                                     # (S_pad, 3E) bf16

    key_mask = None
    if s_pad > seq_len:
        key_idx = lax.broadcasted_iota(jnp.int32, (1, s_pad), 1)
        key_mask = key_idx < seq_len                     # (1, S_pad)

    outs = []
    for h in range(num_heads):
        lo, hi = h * head_dim, (h + 1) * head_dim
        q = (qkv[:, lo:hi].astype(jnp.float32) * scale).astype(COMPUTE_DTYPE)
        k = qkv[:, E + lo:E + hi]
        v = qkv[:, 2 * E + lo:2 * E + hi]
        s = lax.dot_general(q, k, (((1,), (1,)), ((), ())),
                            preferred_element_type=jnp.float32)   # (S_pad, S_pad)
        if key_mask is not None:
            s = jnp.where(key_mask, s, -1e30)
        s = s - jnp.max(s, axis=-1, keepdims=True)
        p = jnp.exp(s)
        p = p * pl.reciprocal(jnp.sum(p, axis=-1, keepdims=True), approx=True)
        outs.append(jnp.dot(p.astype(COMPUTE_DTYPE), v,
                            preferred_element_type=jnp.float32))
    o_ref[0] = jnp.concatenate(outs, axis=-1).astype(o_ref.dtype)


# ----------------------------- kernel wrappers -------------------------------

def matmul(x, w, b, *, activation="none", residual=None, out_dtype=None):
    """Tiled MXU matmul with fused bias / activation / residual epilogue."""
    M, K = x.shape
    K2, N = w.shape
    assert K == K2
    out_dtype = jnp.dtype(out_dtype or x.dtype)

    tm = _pick_tile(M, (256, 128, 64, 32, 16, 8))
    tn = _pick_tile(N, (256, 128))
    tk = _pick_tile(K, (512, 256, 128))
    grid = (M // tm, N // tn, K // tk)

    in_specs = [
        pl.BlockSpec((tm, tk), lambda i, j, k: (i, k)),
        pl.BlockSpec((tk, tn), lambda i, j, k: (k, j)),
        pl.BlockSpec((1, tn), lambda i, j, k: (0, j)),
    ]
    args = [x, w, b.reshape(1, N)]
    has_res = residual is not None
    if has_res:
        in_specs.append(pl.BlockSpec((tm, tn), lambda i, j, k: (i, j)))
        args.append(residual)

    flops = 2 * M * N * K
    bytes_accessed = (M * K * x.dtype.itemsize + K * N * w.dtype.itemsize
                      + M * N * out_dtype.itemsize
                      + (M * N * residual.dtype.itemsize if has_res else 0))
    transcendentals = M * N if activation == "gelu" else 0

    kernel = functools.partial(_matmul_kernel, activation=activation,
                               has_residual=has_res)
    return pl.pallas_call(
        kernel,
        out_shape=jax.ShapeDtypeStruct((M, N), out_dtype),
        grid=grid,
        in_specs=in_specs,
        out_specs=pl.BlockSpec((tm, tn), lambda i, j, k: (i, j)),
        scratch_shapes=[pltpu.VMEM((tm, tn), jnp.float32)],
        compiler_params=pltpu.CompilerParams(
            dimension_semantics=("parallel", "parallel", "arbitrary"),
            vmem_limit_bytes=VMEM_LIMIT),
        cost_estimate=pl.CostEstimate(flops=flops,
                                      transcendentals=transcendentals,
                                      bytes_accessed=bytes_accessed),
    )(*args)


def ln_matmul(x, gamma, beta, w, b, *, activation="none", out_dtype=None):
    """act(LayerNorm(x) @ w + b). Full K per tile (K is the LN feature axis)."""
    M, K = x.shape
    K2, N = w.shape
    assert K == K2
    out_dtype = jnp.dtype(out_dtype or x.dtype)

    tm = _pick_tile(M, (256, 128, 64, 32, 16, 8))
    tn = _pick_tile(N, (512, 256, 128))
    grid = (M // tm, N // tn)

    flops = 2 * M * N * K + 8 * M * K
    bytes_accessed = (M * K * x.dtype.itemsize + K * N * w.dtype.itemsize
                      + M * N * out_dtype.itemsize)
    transcendentals = M + (M * N if activation == "gelu" else 0)

    kernel = functools.partial(_ln_matmul_kernel, activation=activation)
    return pl.pallas_call(
        kernel,
        out_shape=jax.ShapeDtypeStruct((M, N), out_dtype),
        grid=grid,
        in_specs=[
            pl.BlockSpec((tm, K), lambda i, j: (i, 0)),
            pl.BlockSpec((1, K), lambda i, j: (0, 0)),
            pl.BlockSpec((1, K), lambda i, j: (0, 0)),
            pl.BlockSpec((K, tn), lambda i, j: (0, j)),
            pl.BlockSpec((1, tn), lambda i, j: (0, j)),
        ],
        out_specs=pl.BlockSpec((tm, tn), lambda i, j: (i, j)),
        compiler_params=pltpu.CompilerParams(
            dimension_semantics=("parallel", "parallel"),
            vmem_limit_bytes=VMEM_LIMIT),
        cost_estimate=pl.CostEstimate(flops=flops,
                                      transcendentals=transcendentals,
                                      bytes_accessed=bytes_accessed),
    )(x, gamma.reshape(1, K), beta.reshape(1, K), w, b.reshape(1, N))


def attention(qkv, *, num_heads, seq_len):
    """qkv: (B, S_pad, 3E) -> (B, S_pad, E); one batch image per grid step."""
    B, s_pad, three_e = qkv.shape
    E = three_e // 3
    head_dim = E // num_heads
    scale = head_dim ** -0.5

    flops = 4 * B * num_heads * s_pad * s_pad * head_dim
    bytes_accessed = (B * s_pad * three_e + B * s_pad * E) * qkv.dtype.itemsize
    kernel = functools.partial(_attention_kernel, num_heads=num_heads,
                               head_dim=head_dim, seq_len=seq_len, scale=scale)
    return pl.pallas_call(
        kernel,
        out_shape=jax.ShapeDtypeStruct((B, s_pad, E), qkv.dtype),
        grid=(B,),
        in_specs=[pl.BlockSpec((1, s_pad, three_e), lambda b: (b, 0, 0))],
        out_specs=pl.BlockSpec((1, s_pad, E), lambda b: (b, 0, 0)),
        compiler_params=pltpu.CompilerParams(
            dimension_semantics=("parallel",),
            vmem_limit_bytes=VMEM_LIMIT),
        cost_estimate=pl.CostEstimate(
            flops=flops,
            transcendentals=B * num_heads * s_pad * s_pad,
            bytes_accessed=bytes_accessed),
    )(qkv)


# ------------------------------- parameters ---------------------------------

def init_params(key, *, img_size, patch_size, in_chans, embed_dim, depth,
                num_heads, mlp_ratio, num_classes):
    num_patches = (img_size // patch_size) ** 2
    hidden = int(embed_dim * mlp_ratio)

    def dense(k, fan_in, fan_out):
        kw, _ = jax.random.split(k)
        w = (0.02 * jax.random.normal(kw, (fan_in, fan_out), jnp.float32))
        return w.astype(COMPUTE_DTYPE), jnp.zeros((fan_out,), jnp.float32)

    keys = jax.random.split(key, 4 + depth)
    patch_w, patch_b = dense(keys[0], in_chans * patch_size * patch_size, embed_dim)
    cls_token = 0.02 * jax.random.normal(keys[1], (1, 1, embed_dim), jnp.float32)
    pos_embed = 0.02 * jax.random.normal(keys[2], (1, num_patches + 1, embed_dim),
                                         jnp.float32)
    blocks = []
    for d in range(depth):
        bk = jax.random.split(keys[4 + d], 4)
        qkv_w, qkv_b = dense(bk[0], embed_dim, 3 * embed_dim)
        proj_w, proj_b = dense(bk[1], embed_dim, embed_dim)
        fc1_w, fc1_b = dense(bk[2], embed_dim, hidden)
        fc2_w, fc2_b = dense(bk[3], hidden, embed_dim)
        blocks.append(dict(
            ln1_g=jnp.ones((embed_dim,), jnp.float32),
            ln1_b=jnp.zeros((embed_dim,), jnp.float32),
            qkv_w=qkv_w, qkv_b=qkv_b, proj_w=proj_w, proj_b=proj_b,
            ln2_g=jnp.ones((embed_dim,), jnp.float32),
            ln2_b=jnp.zeros((embed_dim,), jnp.float32),
            fc1_w=fc1_w, fc1_b=fc1_b, fc2_w=fc2_w, fc2_b=fc2_b,
        ))

    # classifier head, zero-padded to a 128-lane output slab (lane-dense stores)
    n_pad = _round_up(num_classes, 128)
    head_w, head_b = dense(keys[3], embed_dim, num_classes)
    head_w = jnp.pad(head_w, ((0, 0), (0, n_pad - num_classes)))
    head_b = jnp.pad(head_b, ((0, n_pad - num_classes),))

    return dict(
        patch_size=patch_size, embed_dim=embed_dim, num_heads=num_heads,
        num_classes=num_classes,
        patch_w=patch_w, patch_b=patch_b,
        cls_token=cls_token, pos_embed=pos_embed,
        blocks=blocks,
        norm_g=jnp.ones((embed_dim,), jnp.float32),
        norm_b=jnp.zeros((embed_dim,), jnp.float32),
        head_w=head_w, head_b=head_b,
    )


# -------------------------------- forward ------------------------------------

def classifier_forward(params, x):
    B, C, H, W = x.shape
    p = params["patch_size"]
    E = params["embed_dim"]
    num_heads = params["num_heads"]
    nc = params["num_classes"]

    gh, gw = H // p, W // p
    N = gh * gw
    S = N + 1
    S_pad = _round_up(S, 8)

    # PatchEmbed: Conv2d(k=p, stride=p) as im2col matmul (channel-major patches)
    patches = (x.reshape(B, C, gh, p, gw, p)
                 .transpose(0, 2, 4, 1, 3, 5)
                 .reshape(B * N, C * p * p)).astype(COMPUTE_DTYPE)
    tok = matmul(patches, params["patch_w"], params["patch_b"],
                 out_dtype=jnp.float32)                          # (B*N, E)

    # pos-embed add, cls-token concat and sequence padding: cheap JAX glue
    # TODO(synk): pos-embed add could be fused into the patch-embed epilogue
    # with a row-position-aware index_map; left to XLA (single elementwise op).
    tok = tok.reshape(B, N, E) + params["pos_embed"][:, 1:, :]
    cls = jnp.broadcast_to(params["cls_token"] + params["pos_embed"][:, :1, :],
                           (B, 1, E))
    xs = jnp.concatenate([cls, tok], axis=1)                     # (B, S, E)
    if S_pad > S:
        xs = jnp.pad(xs, ((0, 0), (0, S_pad - S), (0, 0)))
    xs = xs.astype(ACT_DTYPE).reshape(B * S_pad, E)              # (B*S_pad, E)

    for blk in params["blocks"]:
        # --- attention: LN1 fused into qkv; residual fused into proj ---
        qkv = ln_matmul(xs, blk["ln1_g"], blk["ln1_b"],
                        blk["qkv_w"], blk["qkv_b"])              # (B*S_pad, 3E)
        o = attention(qkv.reshape(B, S_pad, 3 * E),
                      num_heads=num_heads, seq_len=S)            # (B, S_pad, E)
        xs = matmul(o.reshape(B * S_pad, E), blk["proj_w"], blk["proj_b"],
                    residual=xs)
        # --- MLP: LN2 fused into fc1(+GELU); residual fused into fc2 ---
        h2 = ln_matmul(xs, blk["ln2_g"], blk["ln2_b"],
                       blk["fc1_w"], blk["fc1_b"], activation="gelu")
        xs = matmul(h2, blk["fc2_w"], blk["fc2_b"], residual=xs)

    # Final norm + head, applied only to the cls token (LayerNorm is row-wise,
    # so norm(x)[:, 0] == norm(x[:, 0])); head is lane-padded, slice logits.
    cls_rows = xs.reshape(B, S_pad, E)[:, 0, :]                  # (B, E)
    logits = ln_matmul(cls_rows, params["norm_g"], params["norm_b"],
                       params["head_w"], params["head_b"],
                       out_dtype=jnp.float32)                    # (B, n_pad)
    return logits[:, :nc]


# ---------------------------------- main --------------------------------------

if __name__ == "__main__":
    # small, consistent shapes
    B, C, IMG, P = 2, 3, 16, 4
    E, DEPTH, HEADS, MLP, NCLS = 32, 2, 4, 4.0, 10

    key = jax.random.PRNGKey(0)
    kx, kp = jax.random.split(key)
    x = jax.random.normal(kx, (B, C, IMG, IMG), jnp.float32)

    params = init_params(kp, img_size=IMG, patch_size=P, in_chans=C,
                         embed_dim=E, depth=DEPTH, num_heads=HEADS,
                         mlp_ratio=MLP, num_classes=NCLS)

    out = classifier_forward(params, x)
    out = jax.block_until_ready(out)
    assert out.shape == (B, NCLS), out.shape
    assert bool(jnp.isfinite(out).all()), "non-finite logits"
    print("KERNEL_OK")
</pallas_src>

<mosaic_0001>
module attributes {stable_mosaic.version = 11 : i64} {
  func.func @_matmul_kernel(%arg0: i32, %arg1: i32, %arg2: i32, %arg3: memref<32x48xbf16, #tpu.memory_space<vmem>>, %arg4: memref<48x32xbf16, #tpu.memory_space<vmem>>, %arg5: memref<1x32xf32, #tpu.memory_space<vmem>>, %arg6: memref<32x32xf32, #tpu.memory_space<vmem>>, %arg7: memref<32x32xf32, #tpu.memory_space<vmem>>) attributes {dimension_semantics = [#tpu.dimension_semantics<parallel>, #tpu.dimension_semantics<parallel>, #tpu.dimension_semantics<arbitrary>], iteration_bounds = array<i64: 1, 1, 1>, scalar_prefetch = 0 : i64, scratch_operands = 1 : i64, tpu.core_type = #tpu.core_type<tc>, window_params = [{transform_indices = @transform_0, window_bounds = array<i64: 32, 48>}, {transform_indices = @transform_1, window_bounds = array<i64: 48, 32>}, {transform_indices = @transform_2, window_bounds = array<i64: 1, 32>}, {transform_indices = @transform_3, window_bounds = array<i64: 32, 32>}]} {
    %c0_i32 = arith.constant 0 : i32
    %0 = arith.cmpi eq, %arg2, %c0_i32 : i32
    %1 = arith.extui %0 : i1 to i32
    %c0_i32_0 = arith.constant 0 : i32
    %2 = arith.cmpi ne, %1, %c0_i32_0 : i32
    scf.if %2 {
      %cst_10 = arith.constant 0.000000e+00 : f32
      %12 = vector.broadcast %cst_10 : f32 to vector<32x32xf32>
      %c0_11 = arith.constant 0 : index
      %c0_12 = arith.constant 0 : index
      %13 = vector.load %arg7[%c0_11, %c0_12] : memref<32x32xf32, #tpu.memory_space<vmem>>, vector<32x32xf32>
      tpu.vector_store %arg7[%c0_11, %c0_12], %12 {strides = array<i32>} : memref<32x32xf32, #tpu.memory_space<vmem>>, vector<32x32xf32>,
    } else {
    }
    %c0 = arith.constant 0 : index
    %c0_1 = arith.constant 0 : index
    %3 = vector.load %arg7[%c0, %c0_1] : memref<32x32xf32, #tpu.memory_space<vmem>>, vector<32x32xf32>
    %c0_2 = arith.constant 0 : index
    %c0_3 = arith.constant 0 : index
    %4 = vector.load %arg3[%c0_2, %c0_3] : memref<32x48xbf16, #tpu.memory_space<vmem>>, vector<32x48xbf16>
    %c0_4 = arith.constant 0 : index
    %c0_5 = arith.constant 0 : index
    %5 = vector.load %arg4[%c0_4, %c0_5] : memref<48x32xbf16, #tpu.memory_space<vmem>>, vector<48x32xbf16>
    %cst = arith.constant dense<0.000000e+00> : vector<32x32xf32>
    %6 = tpu.matmul %4, %5, %cst {dimension_numbers = #tpu.dot_dimension_numbers<[1], [0], [0], [1], [0, 0, 1, 1], [], []>} : vector<32x48xbf16>, vector<48x32xbf16>, vector<32x32xf32> -> vector<32x32xf32>
    %7 = arith.addf %3, %6 : vector<32x32xf32>
    %c0_6 = arith.constant 0 : index
    %c0_7 = arith.constant 0 : index
    %8 = vector.load %arg7[%c0_6, %c0_7] : memref<32x32xf32, #tpu.memory_space<vmem>>, vector<32x32xf32>
    tpu.vector_store %arg7[%c0_6, %c0_7], %7 {strides = array<i32>} : memref<32x32xf32, #tpu.memory_space<vmem>>, vector<32x32xf32>,
    %c0_i32_8 = arith.constant 0 : i32
    %9 = arith.cmpi eq, %arg2, %c0_i32_8 : i32
    %10 = arith.extui %9 : i1 to i32
    %c0_i32_9 = arith.constant 0 : i32
    %11 = arith.cmpi ne, %10, %c0_i32_9 : i32
    scf.if %11 {
      %c0_10 = arith.constant 0 : index
      %c0_11 = arith.constant 0 : index
      %12 = vector.load %arg7[%c0_10, %c0_11] : memref<32x32xf32, #tpu.memory_space<vmem>>, vector<32x32xf32>
      %c0_12 = arith.constant 0 : index
      %c0_13 = arith.constant 0 : index
      %13 = vector.load %arg5[%c0_12, %c0_13] : memref<1x32xf32, #tpu.memory_space<vmem>>, vector<1x32xf32>
      %14 = vector.broadcast %13 : vector<1x32xf32> to vector<32x32xf32>
      %15 = arith.addf %12, %14 : vector<32x32xf32>
      %c0_14 = arith.constant 0 : index
      %c0_15 = arith.constant 0 : index
      %16 = vector.load %arg6[%c0_14, %c0_15] : memref<32x32xf32, #tpu.memory_space<vmem>>, vector<32x32xf32>
      tpu.vector_store %arg6[%c0_14, %c0_15], %15 {strides = array<i32>} : memref<32x32xf32, #tpu.memory_space<vmem>>, vector<32x32xf32>,
    } else {
    }
    return
  }
  func.func @transform_0(%arg0: i32, %arg1: i32, %arg2: i32) -> (i32, i32) {
    %c0_i32 = arith.constant 0 : i32
    return %arg0, %arg2 : i32, i32
  }
  func.func @transform_1(%arg0: i32, %arg1: i32, %arg2: i32) -> (i32, i32) {
    %c0_i32 = arith.constant 0 : i32
    return %arg2, %arg1 : i32, i32
  }
  func.func @transform_2(%arg0: i32, %arg1: i32, %arg2: i32) -> (i32, i32) {
    %c0_i32 = arith.constant 0 : i32
    %c0_i32_0 = arith.constant 0 : i32
    return %c0_i32, %arg1 : i32, i32
  }
  func.func @transform_3(%arg0: i32, %arg1: i32, %arg2: i32) -> (i32, i32) {
    %c0_i32 = arith.constant 0 : i32
    return %arg0, %arg1 : i32, i32
  }
}

</mosaic_0001>

<llo_original>
// kernel: tpu_custom_call.1
$region0: #{tpu_custom_call.1}
  #allocation0 [shape = 'u32[]', space=smem, size = 0x4, offset = 0x4, fixed_abs, tag = 'smem constant byte address 0x4 - core index']
  #allocation1 [shape = 'u32[72,128]{1,0:T(1,128)}', space=vmem, size = 0x9000, scoped, tag = 'internal scratch']
  #allocation2 [shape = 'f32[32,32]{1,0:T(8,128)}', space=vmem, size = 0x4000, scoped, tag = 'scratch operand']
  %s0 = inlined_call_operand.vmem [shape: bf16[32,48], index: 0, kind: input, shape index: {}]
  %s1 = inlined_call_operand.vmem [shape: bf16[48,32], index: 1, kind: input, shape index: {}]
  %s2 = inlined_call_operand.vmem [shape: f32[1,32], index: 2, kind: input, shape index: {}]
  %s3 = inlined_call_operand.hbm [shape: f32[32,32], index: 3, kind: output, shape index: {}]
  %s4 = sld [smem:[#allocation0]]
  $region30: #{tpu_custom_call.1} parent=0
    _
  %s6 = ssub.s32 1, %s4
  %s7 = scalar_select 0, %s6, %s4
  $region1: #{tpu_custom_call.1} parent=0
    #allocation3 [shape = 'u8[16384]{0}', space=vmem, size = 0x4000, scoped, tag = 'output window, operand 0, single buffered']
    #allocation4 [shape = 's32[1]{0}', space=sflag, size = 0x4, scoped, tag = 'scoped memory for tpu_custom_call.1']
    %8 = vsyncpa [#allocation4], 0
    // Predicated region
    $region2: #{tpu_custom_call.1} parent=1 // pred_check
      _
    $region3: #{tpu_custom_call.1} parent=1 // pred_check_branch
      %10 = sbr.rel (0) target = $region5
    $region4: #{tpu_custom_call.1} parent=1 // pred_region
      _
    $region5: #{tpu_custom_call.1} parent=1 // pred_fallthru
      _
    // Predicated region
    $region6: #{tpu_custom_call.1} parent=1 // pred_check
      _
    $region7: #{tpu_custom_call.1} parent=1 // pred_check_branch
      %12 = sbr.rel (0) target = $region9
    $region8: #{tpu_custom_call.1} parent=1 // pred_region
      _
    $region9: #{tpu_custom_call.1} parent=1 // pred_fallthru
      _
    // Predicated region
    $region10: #{tpu_custom_call.1} parent=1 // pred_check
      _
    $region11: #{tpu_custom_call.1} parent=1 // pred_check_branch
      %14 = sbr.rel (0) target = $region13
    $region12: #{tpu_custom_call.1} parent=1 // pred_region
      _
    $region13: #{tpu_custom_call.1} parent=1 // pred_fallthru
      _
    %p16 = scmp.eq.s32.totalorder 0, 0
    // Predicated region
    $region14: #{tpu_custom_call.1} parent=1 // pred_check
      %p17 = pneg %p16
    $region15: #{tpu_custom_call.1} parent=1 // pred_check_branch
      %19 = sbr.rel (%p17) target = $region17
    $region16: #{tpu_custom_call.1} parent=1 // pred_region
      %vm20 = vcmask 261120
      %21 = vst.msk [vmem:[#allocation2] sm:$0xff] %vm20, 0.0
      %22 = vst.msk [vmem:[#allocation2 + $0x8] sm:$0xff] %vm20, 0.0
      %23 = vst.msk [vmem:[#allocation2 + $0x10] sm:$0xff] %vm20, 0.0
      %24 = vst.msk [vmem:[#allocation2 + $0x18] sm:$0xff] %vm20, 0.0
    $region17: #{tpu_custom_call.1} parent=1 // pred_fallthru
      _
    %v25 = vld [vmem:[#allocation2] sm:$0xff]
    %v26 = vld [vmem:[#allocation2 + $0x8] sm:$0xff]
    %v27 = vld [vmem:[#allocation2 + $0x10] sm:$0xff]
    %v28 = vld [vmem:[#allocation2 + $0x18] sm:$0xff]
    %v29 = vld [vmem:[%s0] sm:$0xf]
    %v30 = vld [vmem:[%s0 + $0x4] sm:$0xf]
    %v31 = vld [vmem:[%s0 + $0x8] sm:$0xf]
    %v32 = vld [vmem:[%s0 + $0xc] sm:$0xf]
    %v33 = vld [vmem:[%s1] sm:$0xf]
    %v34 = vld [vmem:[%s1 + $0x4] sm:$0xf]
    %v35 = vld [vmem:[%s1 + $0x8] sm:$0xf]
    %v36 = vld [vmem:[%s1 + $0xc] sm:$0xf]
    %v37 = vld [vmem:[%s1 + $0x10] sm:$0xf]
    %v38 = vld [vmem:[%s1 + $0x14] sm:$0xf]
    %v43 = vunpack.c.l.b16 %v29
    %v44 = vunpack.c.l.b16 %v30
    %v45 = vunpack.c.l.b16 %v31
    %v46 = vunpack.c.l.b16 %v32
    %v47 = vpack.c.b16 %v44, %v43
    %v48 = vpack.c.b16 %v46, %v45
    %v55 = vunpack.c.l.b16 %v33
    %v56 = vunpack.c.l.b16 %v34
    %v57 = vunpack.c.l.b16 %v35
    %v58 = vunpack.c.l.b16 %v36
    %v59 = vunpack.c.l.b16 %v37
    %v60 = vunpack.c.l.b16 %v38
    %v61 = vpack.c.b16 %v56, %v55
    %v62 = vpack.c.b16 %v58, %v57
    %v63 = vpack.c.b16 %v60, %v59
    %vm67 = vcmask 392192
    %v69 = vsel %vm67, %v47, 0
    %v72 = vsel %vm67, %v48, 0
    %74 = vmatpush.bf16.msra.mxu0 0
    %75 = vmatpush.bf16.msra.mxu0 0
    %76 = vmatpush.bf16.msra.mxu0 0
    %77 = vmatpush.bf16.msra.mxu0 0
    %78 = vmatpush.bf16.msra.mxu0 0
    %79 = vmatpush.bf16.msra.mxu0 %v63
    %80 = vmatpush.bf16.msra.mxu0 %v62
    %81 = vmatpush.bf16.msra.mxu0 %v61
    %82 = vmatmul.bf16.gmra.mxu0 %v69
    %v83 = vpop.f32.mrf.mxu0
    %v84 = vadd.f32 0.0, %v83
    %v85 = vpop.f32.mrf.mxu0
    %v86 = vadd.f32 0.0, %v85
    %87 = vmatmul.bf16.gmra.mxu0 %v72
    %v88 = vpop.f32.mrf.mxu0
    %v89 = vadd.f32 0.0, %v88
    %v90 = vpop.f32.mrf.mxu0
    %v91 = vadd.f32 0.0, %v90
    %92 = vdwg.mxu0
    %v93 = vadd.f32 %v25, %v84
    %v94 = vadd.f32 %v26, %v86
    %v95 = vadd.f32 %v27, %v89
    %v96 = vadd.f32 %v28, %v91
    %vm97 = vcmask 261120
    %98 = vst.msk [vmem:[#allocation2] sm:$0xff] %vm97, %v93
    %99 = vst.msk [vmem:[#allocation2 + $0x8] sm:$0xff] %vm97, %v94
    %100 = vst.msk [vmem:[#allocation2 + $0x10] sm:$0xff] %vm97, %v95
    %101 = vst.msk [vmem:[#allocation2 + $0x18] sm:$0xff] %vm97, %v96
    // Predicated region
    $region18: #{tpu_custom_call.1} parent=1 // pred_check
      %p102 = pneg %p16
    $region19: #{tpu_custom_call.1} parent=1 // pred_check_branch
      %104 = sbr.rel (%p102) target = $region21
    $region20: #{tpu_custom_call.1} parent=1 // pred_region
      %v105 = vld [vmem:[#allocation2] sm:$0xff]
      %v106 = vld [vmem:[#allocation2 + $0x8] sm:$0xff]
      %v107 = vld [vmem:[#allocation2 + $0x10] sm:$0xff]
      %v108 = vld [vmem:[#allocation2 + $0x18] sm:$0xff]
      %v109 = vld [vmem:[%s2] sm:$0x1]
      %v111 = vperm.slane %v109, 0
      %v113 = vadd.f32 %v105, %v111
      %v114 = vadd.f32 %v106, %v111
      %v115 = vadd.f32 %v107, %v111
      %v116 = vadd.f32 %v108, %v111
      %117 = vst.msk [vmem:[#allocation3] sm:$0xff] %vm97, %v113
      %118 = vst.msk [vmem:[#allocation3 + $0x8] sm:$0xff] %vm97, %v114
      %119 = vst.msk [vmem:[#allocation3 + $0x10] sm:$0xff] %vm97, %v115
      %120 = vst.msk [vmem:[#allocation3 + $0x18] sm:$0xff] %vm97, %v116
    $region21: #{tpu_custom_call.1} parent=1 // pred_fallthru
      _
    // Predicated region
    $region22: #{tpu_custom_call.1} parent=1 // pred_check
      _
    $region23: #{tpu_custom_call.1} parent=1 // pred_check_branch
      %122 = sbr.rel (0) target = $region25
    $region24: #{tpu_custom_call.1} parent=1 // pred_region
      %124 = vsyncadd [#allocation4], 0
      %s125 = sshll.u32 [#allocation3], 4
      %s126 = int_to_ptr.vmem [resolvable:$true] %s125
      %s127 = sshll.u32 %s3, 4
      %s128 = int_to_ptr.hbm [resolvable:$true] %s127
      %133 = dma.vmem_to_hbm [thread:$0]  %s126, 512, %s128, [#allocation4], 128, 128, 8
    $region25: #{tpu_custom_call.1} parent=1 // pred_fallthru
      _
    // Predicated region
    $region26: #{tpu_custom_call.1} parent=1 // pred_check
      _
    $region27: #{tpu_custom_call.1} parent=1 // pred_check_branch
      %135 = sbr.rel (0) target = $region29
    $region28: #{tpu_custom_call.1} parent=1 // pred_region
      %137 = dma.done [#allocation4], 512
    $region29: #{tpu_custom_call.1} parent=1 // pred_fallthru
      _
    %138 = vsyncpa [#allocation4], 1

</llo_original>
